<compile_context>
chip_gen: v6e
topology: v6e:2x2x1
jax: 0.10.0
libtpu: 0.0.40
codegen_flags: <defaults>
</compile_context>

<pallas_src>
import math

import jax
import jax.numpy as jnp
from jax import lax
from jax.experimental import pallas as pl
from jax.experimental.pallas import tpu as pltpu

_PI = math.pi
_TWO_PI = 2.0 * math.pi
_LANES = 128


def _make_euler_kernel(tr, rows, needs_mask):
    """Build the kernel body with static tile geometry baked in."""

    def kernel(x_ref, xh_ref, out_ref):
        # x_ref / xh_ref blocks: (1, C, tr, 128) storage-dtype;
        # out_ref block: (1, 1, 1, 128) f32.
        def chan_sq(c, scale):
            a = x_ref[0, c].astype(jnp.float32)     # (tr, 128), full vreg occupancy
            b = xh_ref[0, c].astype(jnp.float32)
            # |angle1 - angle2| = scale * |x_c - xh_c|;  phi_1 wrap = min(d, 2*pi - d)
            d = scale * jnp.abs(a - b)
            ed = jnp.minimum(d, _TWO_PI - d)
            return ed * ed

        # Per-pixel distance^2 (the per-pixel sqrt followed by squaring in the
        # norm cancels exactly, so it is never materialized). Only channels
        # 0..2 are ever read.
        d2 = chan_sq(0, _PI) + chan_sq(1, 0.5 * _PI) + chan_sq(2, _PI)  # (tr, 128)

        if needs_mask:
            # Last tile along the row axis is partial: out-of-bounds block data
            # is undefined, so zero it before the reduction.
            t = pl.program_id(1)
            grow = t * tr + lax.broadcasted_iota(jnp.int32, (tr, _LANES), 0)
            d2 = jnp.where(grow < rows, d2, 0.0)

        # Per-tile lane-vector partial sum (unmasked 128-lane vst); cross-lane
        # reduction + final sqrt happen in the wrapper in f32.
        out_ref[...] = jnp.sum(d2, axis=0, keepdims=True)[None, None]  # (1,1,1,128)

    return kernel


def euler_loss_2d(x, x_hat, *, max_rows_per_tile=1024):
    """x, x_hat: [B, C, H, W] (C >= 3), any float dtype. Returns the scalar loss
    sqrt(sum_over_pixels(distance^2)) — identical to the PyTorch forward."""
    assert x.shape == x_hat.shape
    B, C, H, W = x.shape
    assert C >= 3
    assert max_rows_per_tile % 16 == 0  # keep bf16 sublane packing happy

    HW = H * W

    def as_rows(a):
        # Metadata-only reshapes for contiguous NCHW input.
        af = a.reshape(B, C, HW)
        if HW % _LANES != 0:
            # TODO(synk): rare ragged-lane case; a single small tail pad (zeros
            # contribute 0 to the loss) keeps the lane-dense layout.
            af = jnp.pad(af, ((0, 0), (0, 0), (0, _LANES - HW % _LANES)))
        return af.reshape(B, C, -1, _LANES)

    xs = as_rows(x)
    xhs = as_rows(x_hat)
    rows = xs.shape[2]

    # Tile the row axis so VMEM stays bounded and the DMA pipeline has steps
    # to overlap.
    if rows <= max_rows_per_tile:
        tr = rows                      # block dim == full dim -> always legal
    else:
        tr = max_rows_per_tile         # multiple of 16 (hence of 8)
    n_tiles = pl.cdiv(rows, tr)

    # v7x megacore balance: prefer >= 2 grid steps when the problem allows it.
    if B * n_tiles < 2 and rows > 8:
        tr = max(8, ((pl.cdiv(rows, 2) + 7) // 8) * 8)
        n_tiles = pl.cdiv(rows, tr)

    needs_mask = (n_tiles * tr) != rows
    kernel = _make_euler_kernel(tr, rows, needs_mask)

    partials = pl.pallas_call(
        kernel,
        out_shape=jax.ShapeDtypeStruct((B, n_tiles, 1, _LANES), jnp.float32),
        grid_spec=pltpu.PrefetchScalarGridSpec(
            num_scalar_prefetch=0,
            grid=(B, n_tiles),          # n_tiles inner -> contiguous HBM streaming
            in_specs=[
                pl.BlockSpec((1, C, tr, _LANES), lambda b, t: (b, 0, t, 0)),
                pl.BlockSpec((1, C, tr, _LANES), lambda b, t: (b, 0, t, 0)),
            ],
            out_specs=pl.BlockSpec((1, 1, 1, _LANES), lambda b, t: (b, t, 0, 0)),
        ),
        compiler_params=pltpu.CompilerParams(
            # Every grid step writes an independent output block -> fully
            # parallel; on v7x the (B, n_tiles) grid is sharded across both TCs.
            dimension_semantics=("parallel", "parallel"),
        ),
    )(xs, xhs)

    # torch.linalg.vector_norm(flatten(distance)) = sqrt(sum(distance**2))
    return jnp.sqrt(jnp.sum(partials))


def _euler_distance(t1, t2):
    d = jnp.abs(t1 - t2)
    return jnp.minimum(d, _TWO_PI - d)


def _euler_loss_ref(x, x_hat):
    """Plain-JAX reference mirroring the PyTorch forward exactly."""
    alpha1 = _PI * (x[:, 0] - 1.0)
    alpha2 = _PI * (x_hat[:, 0] - 1.0)
    beta1 = _PI * (x[:, 1] - 1.0) * 0.5
    beta2 = _PI * (x_hat[:, 1] - 1.0) * 0.5
    gamma1 = _PI * (x[:, 2] - 1.0)
    gamma2 = _PI * (x_hat[:, 2] - 1.0)
    dist = jnp.sqrt(
        _euler_distance(alpha1, alpha2) ** 2
        + _euler_distance(beta1, beta2) ** 2
        + _euler_distance(gamma1, gamma2) ** 2
    )
    return jnp.sqrt(jnp.sum(dist.reshape(-1) ** 2))


if __name__ == "__main__":
    key = jax.random.PRNGKey(0)
    k1, k2 = jax.random.split(key)
    B, C, H, W = 2, 4, 16, 16  # NCHW, channels 0..2 are Euler angle encodings
    x = jax.random.uniform(k1, (B, C, H, W), dtype=jnp.float32)
    x_hat = jax.random.uniform(k2, (B, C, H, W), dtype=jnp.float32)

    loss = euler_loss_2d(x, x_hat)
    loss = jax.block_until_ready(loss)

    ref = _euler_loss_ref(x, x_hat)
    assert jnp.allclose(loss, ref, rtol=1e-5, atol=1e-5), (loss, ref)

    print("KERNEL_OK")
</pallas_src>

<mosaic_0001>
module attributes {stable_mosaic.version = 11 : i64} {
  func.func @kernel(%arg0: i32, %arg1: i32, %arg2: memref<1x4x2x128xf32, #tpu.memory_space<vmem>>, %arg3: memref<1x4x2x128xf32, #tpu.memory_space<vmem>>, %arg4: memref<1x1x1x128xf32, #tpu.memory_space<vmem>>) attributes {dimension_semantics = [#tpu.dimension_semantics<parallel>, #tpu.dimension_semantics<parallel>], iteration_bounds = array<i64: 2, 1>, scalar_prefetch = 0 : i64, scratch_operands = 0 : i64, tpu.core_type = #tpu.core_type<tc>, window_params = [{transform_indices = @transform_0, window_bounds = array<i64: 1, 4, 2, 128>}, {transform_indices = @transform_1, window_bounds = array<i64: 1, 4, 2, 128>}, {transform_indices = @transform_2, window_bounds = array<i64: 1, 1, 1, 128>}]} {
    %c0 = arith.constant 0 : index
    %c0_0 = arith.constant 0 : index
    %c0_1 = arith.constant 0 : index
    %c0_2 = arith.constant 0 : index
    %0 = vector.load %arg2[%c0, %c0_0, %c0_1, %c0_2] : memref<1x4x2x128xf32, #tpu.memory_space<vmem>>, vector<1x1x2x128xf32>
    %1 = vector.shape_cast %0 : vector<1x1x2x128xf32> to vector<2x128xf32>
    %c0_3 = arith.constant 0 : index
    %c0_4 = arith.constant 0 : index
    %c0_5 = arith.constant 0 : index
    %c0_6 = arith.constant 0 : index
    %2 = vector.load %arg3[%c0_3, %c0_4, %c0_5, %c0_6] : memref<1x4x2x128xf32, #tpu.memory_space<vmem>>, vector<1x1x2x128xf32>
    %3 = vector.shape_cast %2 : vector<1x1x2x128xf32> to vector<2x128xf32>
    %4 = arith.subf %1, %3 : vector<2x128xf32>
    %5 = math.absf %4 : vector<2x128xf32>
    %cst = arith.constant 3.14159274 : f32
    %6 = vector.broadcast %cst : f32 to vector<2x128xf32>
    %7 = arith.mulf %6, %5 : vector<2x128xf32>
    %cst_7 = arith.constant 6.28318548 : f32
    %8 = vector.broadcast %cst_7 : f32 to vector<2x128xf32>
    %9 = arith.subf %8, %7 : vector<2x128xf32>
    %10 = arith.minimumf %7, %9 : vector<2x128xf32>
    %11 = arith.mulf %10, %10 : vector<2x128xf32>
    %c0_8 = arith.constant 0 : index
    %c1 = arith.constant 1 : index
    %c0_9 = arith.constant 0 : index
    %c0_10 = arith.constant 0 : index
    %12 = vector.load %arg2[%c0_8, %c1, %c0_9, %c0_10] : memref<1x4x2x128xf32, #tpu.memory_space<vmem>>, vector<1x1x2x128xf32>
    %13 = vector.shape_cast %12 : vector<1x1x2x128xf32> to vector<2x128xf32>
    %c0_11 = arith.constant 0 : index
    %c1_12 = arith.constant 1 : index
    %c0_13 = arith.constant 0 : index
    %c0_14 = arith.constant 0 : index
    %14 = vector.load %arg3[%c0_11, %c1_12, %c0_13, %c0_14] : memref<1x4x2x128xf32, #tpu.memory_space<vmem>>, vector<1x1x2x128xf32>
    %15 = vector.shape_cast %14 : vector<1x1x2x128xf32> to vector<2x128xf32>
    %16 = arith.subf %13, %15 : vector<2x128xf32>
    %17 = math.absf %16 : vector<2x128xf32>
    %cst_15 = arith.constant 1.57079637 : f32
    %18 = vector.broadcast %cst_15 : f32 to vector<2x128xf32>
    %19 = arith.mulf %18, %17 : vector<2x128xf32>
    %cst_16 = arith.constant 6.28318548 : f32
    %20 = vector.broadcast %cst_16 : f32 to vector<2x128xf32>
    %21 = arith.subf %20, %19 : vector<2x128xf32>
    %22 = arith.minimumf %19, %21 : vector<2x128xf32>
    %23 = arith.mulf %22, %22 : vector<2x128xf32>
    %24 = arith.addf %11, %23 : vector<2x128xf32>
    %c0_17 = arith.constant 0 : index
    %c2 = arith.constant 2 : index
    %c0_18 = arith.constant 0 : index
    %c0_19 = arith.constant 0 : index
    %25 = vector.load %arg2[%c0_17, %c2, %c0_18, %c0_19] : memref<1x4x2x128xf32, #tpu.memory_space<vmem>>, vector<1x1x2x128xf32>
    %26 = vector.shape_cast %25 : vector<1x1x2x128xf32> to vector<2x128xf32>
    %c0_20 = arith.constant 0 : index
    %c2_21 = arith.constant 2 : index
    %c0_22 = arith.constant 0 : index
    %c0_23 = arith.constant 0 : index
    %27 = vector.load %arg3[%c0_20, %c2_21, %c0_22, %c0_23] : memref<1x4x2x128xf32, #tpu.memory_space<vmem>>, vector<1x1x2x128xf32>
    %28 = vector.shape_cast %27 : vector<1x1x2x128xf32> to vector<2x128xf32>
    %29 = arith.subf %26, %28 : vector<2x128xf32>
    %30 = math.absf %29 : vector<2x128xf32>
    %cst_24 = arith.constant 3.14159274 : f32
    %31 = vector.broadcast %cst_24 : f32 to vector<2x128xf32>
    %32 = arith.mulf %31, %30 : vector<2x128xf32>
    %cst_25 = arith.constant 6.28318548 : f32
    %33 = vector.broadcast %cst_25 : f32 to vector<2x128xf32>
    %34 = arith.subf %33, %32 : vector<2x128xf32>
    %35 = arith.minimumf %32, %34 : vector<2x128xf32>
    %36 = arith.mulf %35, %35 : vector<2x128xf32>
    %37 = arith.addf %24, %36 : vector<2x128xf32>
    %cst_26 = arith.constant dense<0.000000e+00> : vector<128xf32>
    %38 = vector.multi_reduction <add>, %37, %cst_26 [0] : vector<2x128xf32> to vector<128xf32>
    %39 = vector.shape_cast %38 : vector<128xf32> to vector<1x128xf32>
    %40 = vector.shape_cast %39 : vector<1x128xf32> to vector<1x1x1x128xf32>
    %c0_27 = arith.constant 0 : index
    %c0_28 = arith.constant 0 : index
    %c0_29 = arith.constant 0 : index
    %c0_30 = arith.constant 0 : index
    %41 = vector.load %arg4[%c0_27, %c0_28, %c0_29, %c0_30] : memref<1x1x1x128xf32, #tpu.memory_space<vmem>>, vector<1x1x1x128xf32>
    tpu.vector_store %arg4[%c0_27, %c0_28, %c0_29, %c0_30], %40 {strides = array<i32>} : memref<1x1x1x128xf32, #tpu.memory_space<vmem>>, vector<1x1x1x128xf32>,
    return
  }
  func.func @transform_0(%arg0: i32, %arg1: i32) -> (i32, i32, i32, i32) {
    %c0_i32 = arith.constant 0 : i32
    %c0_i32_0 = arith.constant 0 : i32
    %c0_i32_1 = arith.constant 0 : i32
    return %arg0, %c0_i32, %arg1, %c0_i32_0 : i32, i32, i32, i32
  }
  func.func @transform_1(%arg0: i32, %arg1: i32) -> (i32, i32, i32, i32) {
    %c0_i32 = arith.constant 0 : i32
    %c0_i32_0 = arith.constant 0 : i32
    %c0_i32_1 = arith.constant 0 : i32
    return %arg0, %c0_i32, %arg1, %c0_i32_0 : i32, i32, i32, i32
  }
  func.func @transform_2(%arg0: i32, %arg1: i32) -> (i32, i32, i32, i32) {
    %c0_i32 = arith.constant 0 : i32
    %c0_i32_0 = arith.constant 0 : i32
    %c0_i32_1 = arith.constant 0 : i32
    return %arg0, %arg1, %c0_i32, %c0_i32_0 : i32, i32, i32, i32
  }
}

</mosaic_0001>

<llo_original>
// kernel: tpu_custom_call.1
$region0: #{tpu_custom_call.1}
  #allocation0 [shape = 'u32[]', space=smem, size = 0x4, offset = 0x4, fixed_abs, tag = 'smem constant byte address 0x4 - core index']
  #allocation1 [shape = 'u32[144,128]{1,0:T(1,128)}', space=vmem, size = 0x12000, scoped, tag = 'internal scratch']
  %s0 = inlined_call_operand.hbm [shape: f32[2,4,2,128], index: 0, kind: input, shape index: {}]
  %s1 = inlined_call_operand.hbm [shape: f32[2,4,2,128], index: 1, kind: input, shape index: {}]
  %s2 = inlined_call_operand.hbm [shape: f32[2,1,1,128], index: 2, kind: output, shape index: {}]
  %s3 = sld [smem:[#allocation0]]
  $region49: #{tpu_custom_call.1} parent=0
    _
  %s5 = ssub.s32 1, %s3
  %s6 = scalar_select 0, %s5, %s3
  $region1: #{tpu_custom_call.1} parent=0
    #allocation2 [shape = 'u8[8192]{0}', space=vmem, size = 0x2000, scoped, tag = 'input window, operand 0']
    #allocation3 [shape = 's32[2]{0}', space=sflag, size = 0x8, scoped, tag = 'scoped memory for tpu_custom_call.1']
    #allocation4 [shape = 's32[2]{0}', space=sflag, size = 0x8, scoped, tag = 'scoped memory for tpu_custom_call.1']
    #allocation5 [shape = 'u8[8192]{0}', space=vmem, size = 0x2000, scoped, tag = 'input window, operand 1']
    #allocation6 [shape = 's32[2]{0}', space=sflag, size = 0x8, scoped, tag = 'scoped memory for tpu_custom_call.1']
    #allocation7 [shape = 'u8[1024]{0}', space=vmem, size = 0x400, scoped, tag = 'output window, operand 0']
    %7 = vsyncpa [#allocation3], 0
    %s8 = scalar_lea.sflag [#allocation3], 1
    %9 = vsyncpa %s8, 0
    %10 = vsyncpa [#allocation6], 0
    %s11 = scalar_lea.sflag [#allocation6], 1
    %12 = vsyncpa %s11, 0
    %13 = vsyncpa [#allocation4], 0
    %s14 = scalar_lea.sflag [#allocation4], 1
    %15 = vsyncpa %s14, 0
    loop: start=0, step=1, limit=4
    $region2: #{tpu_custom_call.1} parent=1 // loop_pre_header
      _
    $region3: #{tpu_custom_call.1} parent=1 // loop_header
      %s17 = sphi 0, %s21
      %p18 = scmp.ge.s32.totalorder %s17, 4
      %s24 = sphi 0, %s36
      %s25 = sphi 0, %s32
      %s26 = sphi 0, %s24
      %s27 = sphi 0, %s25
      %s28 = sphi 0, %s26
      %s29 = sphi 0, %s27
      %s41 = sphi 0, %s43
      %s44 = sphi 0, %s41
      %s45 = sphi 0, %s44
      %s61 = sphi 0, %s45
      %s69 = sphi 0, %s71
      %s72 = sphi 0, %s69
      %s73 = sphi 0, %s72
      %s89 = sphi 0, %s73
      %s97 = sphi 0, %s99
      %s100 = sphi 0, %s97
      %s101 = sphi 0, %s100
      %s117 = sphi 0, %s101
    $region4: #{tpu_custom_call.1} parent=1 // loop_header_branch
      %20 = sbr.rel (%p18) target = $region8
    $region5: #{tpu_custom_call.1} parent=1 // loop_body
      %s22 = ssub.s32 %s17, 1
      %s23 = ssub.s32 %s17, 2
      %s30 = sadd.s32 1, %s25
      %p31 = scmp.ge.s32.totalorder %s30, 1
      %s32 = scalar_select %p31, 0, %s30
      %s33 = sadd.s32 1, %s24
      %s34 = scalar_select %p31, %s33, %s24
      %p35 = scmp.ge.s32.totalorder %s34, 2
      %s36 = scalar_select %p35, 0, %s34
      %s37 = ssub.s32 %s24, %s36
      %s38 = ssub.s32 %s25, %s32
      %s39 = sor.u32 %s37, %s38
      %p40 = scmp.eq.s32.totalorder %s39, 0
      %s42 = sadd.s32 %s41, 1
      %s43 = scalar_select %p40, %s41, %s42
      %p46 = pneg %p40
      %p47 = scmp.eq.s32.totalorder %s17, 1
      %p48 = por %p46, %p47
      %p49 = scmp.ne.s32.totalorder %s41, %s44
      %p50 = scmp.eq.s32.totalorder %s17, 0
      %p51 = por %p49, %p50
      %p52 = scmp.ne.s32.totalorder %s41, %s44
      %p53 = scmp.eq.s32.totalorder %s22, 1
      %p54 = por %p52, %p53
      %p55 = scmp.ne.s32.totalorder %s44, %s45
      %p56 = scmp.eq.s32.totalorder %s22, 0
      %p57 = por %p55, %p56
      %p58 = scmp.ne.s32.totalorder %s44, %s45
      %p59 = scmp.eq.s32.totalorder %s23, 1
      %p60 = por %p58, %p59
      %p62 = scmp.ne.s32.totalorder %s45, %s61
      %p63 = scmp.eq.s32.totalorder %s23, 0
      %p64 = por %p62, %p63
      %s65 = ssub.s32 %s24, %s36
      %s66 = ssub.s32 %s25, %s32
      %s67 = sor.u32 %s65, %s66
      %p68 = scmp.eq.s32.totalorder %s67, 0
      %s70 = sadd.s32 %s69, 1
      %s71 = scalar_select %p68, %s69, %s70
      %p74 = pneg %p68
      %p75 = scmp.eq.s32.totalorder %s17, 1
      %p76 = por %p74, %p75
      %p77 = scmp.ne.s32.totalorder %s69, %s72
      %p78 = scmp.eq.s32.totalorder %s17, 0
      %p79 = por %p77, %p78
      %p80 = scmp.ne.s32.totalorder %s69, %s72
      %p81 = scmp.eq.s32.totalorder %s22, 1
      %p82 = por %p80, %p81
      %p83 = scmp.ne.s32.totalorder %s72, %s73
      %p84 = scmp.eq.s32.totalorder %s22, 0
      %p85 = por %p83, %p84
      %p86 = scmp.ne.s32.totalorder %s72, %s73
      %p87 = scmp.eq.s32.totalorder %s23, 1
      %p88 = por %p86, %p87
      %p90 = scmp.ne.s32.totalorder %s73, %s89
      %p91 = scmp.eq.s32.totalorder %s23, 0
      %p92 = por %p90, %p91
      %s93 = ssub.s32 %s24, %s36
      %s94 = ssub.s32 %s25, %s32
      %s95 = sor.u32 %s93, %s94
      %p96 = scmp.eq.s32.totalorder %s95, 0
      %s98 = sadd.s32 %s97, 1
      %s99 = scalar_select %p96, %s97, %s98
      %p102 = pneg %p96
      %p103 = scmp.eq.s32.totalorder %s17, 1
      %p104 = por %p102, %p103
      %p105 = scmp.ne.s32.totalorder %s97, %s100
      %p106 = scmp.eq.s32.totalorder %s17, 0
      %p107 = por %p105, %p106
      %p108 = scmp.ne.s32.totalorder %s97, %s100
      %p109 = scmp.eq.s32.totalorder %s22, 1
      %p110 = por %p108, %p109
      %p111 = scmp.ne.s32.totalorder %s100, %s101
      %p112 = scmp.eq.s32.totalorder %s22, 0
      %p113 = por %p111, %p112
      %p114 = scmp.ne.s32.totalorder %s100, %s101
      %p115 = scmp.eq.s32.totalorder %s23, 1
      %p116 = por %p114, %p115
      %p118 = scmp.ne.s32.totalorder %s101, %s117
      %p119 = scmp.eq.s32.totalorder %s23, 0
      %p120 = por %p118, %p119
      %p121 = scmp.le.s32.totalorder 1, %s17
      %p122 = scmp.lt.s32.totalorder %s17, 3
      %p123 = pnand %p121, %p122
      %p124 = pneg %p123
      // Predicated region
      $region9: #{tpu_custom_call.1} parent=5 // pred_check
        _
      $region10: #{tpu_custom_call.1} parent=5 // pred_check_branch
        %126 = sbr.rel (%p123) target = $region12
      $region11: #{tpu_custom_call.1} parent=5 // pred_region
        %s127 = ssub.s32 %s17, 1
      $region12: #{tpu_custom_call.1} parent=5 // pred_fallthru
        _
      %p128 = scmp.lt.s32.totalorder %s17, 2
      // Predicated region
      $region13: #{tpu_custom_call.1} parent=5 // pred_check
        %p129 = pneg %p128
      $region14: #{tpu_custom_call.1} parent=5 // pred_check_branch
        %131 = sbr.rel (%p129) target = $region16
      $region15: #{tpu_custom_call.1} parent=5 // pred_region
        // Predicated region
        $region17: #{tpu_custom_call.1} parent=15 // pred_check
          %p132 = pneg %p51
        $region18: #{tpu_custom_call.1} parent=15 // pred_check_branch
          %134 = sbr.rel (%p132) target = $region20
        $region19: #{tpu_custom_call.1} parent=15 // pred_region
          %s135 = sand.u32 %s41, 1
          %s136 = scalar_lea.sflag [#allocation3], %s135
          %s137 = sand.u32 %s41, 1
          %s138 = smul.addr %s137, 8
          %s139 = scalar_lea.vmem [#allocation2], %s138
          %s141 = ssub.s32 128, 128
          %142 = vsyncadd %s136, %s141
          %s143 = smul.addr %s24, 4
          %s144 = sadd.s32 %s25, %s143
          %s145 = smul.addr %s144, 32
          %s146 = scalar_lea.hbm %s0, %s145
          %s147 = sshll.u32 %s139, 4
          %s148 = int_to_ptr.vmem [resolvable:$true] %s147
          %153 = dma.hbm_to_vmem [thread:$0]  %s146, 128, %s148, %s136, 32, 32, 2
        $region20: #{tpu_custom_call.1} parent=15 // pred_fallthru
          _
        // Predicated region
        $region21: #{tpu_custom_call.1} parent=15 // pred_check
          %p154 = pneg %p79
        $region22: #{tpu_custom_call.1} parent=15 // pred_check_branch
          %156 = sbr.rel (%p154) target = $region24
        $region23: #{tpu_custom_call.1} parent=15 // pred_region
          %s157 = sand.u32 %s69, 1
          %s158 = scalar_lea.sflag [#allocation6], %s157
          %s159 = sand.u32 %s69, 1
          %s160 = smul.addr %s159, 8
          %s161 = scalar_lea.vmem [#allocation5], %s160
          %s163 = ssub.s32 128, 128
          %164 = vsyncadd %s158, %s163
          %s165 = smul.addr %s24, 4
          %s166 = sadd.s32 %s25, %s165
          %s167 = smul.addr %s166, 32
          %s168 = scalar_lea.hbm %s1, %s167
          %s169 = sshll.u32 %s161, 4
          %s170 = int_to_ptr.vmem [resolvable:$true] %s169
          %175 = dma.hbm_to_vmem [thread:$0]  %s168, 128, %s170, %s158, 32, 32, 2
        $region24: #{tpu_custom_call.1} parent=15 // pred_fallthru
          _
      $region16: #{tpu_custom_call.1} parent=5 // pred_fallthru
        _
      %p176 = scmp.le.s32.totalorder 1, %s17
      %p177 = scmp.lt.s32.totalorder %s17, 3
      %p178 = pnand %p176, %p177
      %p179 = pneg %p178
      // Predicated region
      $region25: #{tpu_custom_call.1} parent=5 // pred_check
        _
      $region26: #{tpu_custom_call.1} parent=5 // pred_check_branch
        %181 = sbr.rel (%p178) target = $region28
      $region27: #{tpu_custom_call.1} parent=5 // pred_region
        %s182 = ssub.s32 %s17, 1
        %s183 = sand.u32 %s44, 1
        %s184 = scalar_lea.sflag [#allocation3], %s183
        %s185 = sand.u32 %s44, 1
        %s186 = smul.addr %s185, 8
        %s187 = scalar_lea.vmem [#allocation2], %s186
        // Predicated region
        $region29: #{tpu_custom_call.1} parent=27 // pred_check
          %p188 = pneg %p57
        $region30: #{tpu_custom_call.1} parent=27 // pred_check_branch
          %190 = sbr.rel (%p188) target = $region32
        $region31: #{tpu_custom_call.1} parent=27 // pred_region
          %191 = dma.done %s184, 128
        $region32: #{tpu_custom_call.1} parent=27 // pred_fallthru
          _
        %s192 = sand.u32 %s72, 1
        %s193 = scalar_lea.sflag [#allocation6], %s192
        %s194 = sand.u32 %s72, 1
        %s195 = smul.addr %s194, 8
        %s196 = scalar_lea.vmem [#allocation5], %s195
        // Predicated region
        $region33: #{tpu_custom_call.1} parent=27 // pred_check
          %p197 = pneg %p85
        $region34: #{tpu_custom_call.1} parent=27 // pred_check_branch
          %199 = sbr.rel (%p197) target = $region36
        $region35: #{tpu_custom_call.1} parent=27 // pred_region
          %200 = dma.done %s193, 128
        $region36: #{tpu_custom_call.1} parent=27 // pred_fallthru
          _
        %s201 = sand.u32 %s44, 1
        %s202 = scalar_lea.sflag [#allocation3], %s201
        %s203 = sand.u32 %s44, 1
        %s204 = smul.addr %s203, 8
        %s205 = scalar_lea.vmem [#allocation2], %s204
        %p206 = pneg %p57
        %p207 = pneg %p54
        %s208 = sand.u32 %s72, 1
        %s209 = scalar_lea.sflag [#allocation6], %s208
        %s210 = sand.u32 %s72, 1
        %s211 = smul.addr %s210, 8
        %s212 = scalar_lea.vmem [#allocation5], %s211
        %p213 = pneg %p85
        %p214 = pneg %p82
        %p215 = pneg %p113
        %p216 = pneg %p110
        %s217 = sand.u32 %s100, 1
        %s218 = scalar_lea.sflag [#allocation4], %s217
        %s219 = sand.u32 %s100, 1
        %s220 = scalar_lea.vmem [#allocation7], %s219
        %v221 = vld [vmem:[%s187] sm:$0x3]
        %v222 = vld [vmem:[%s196] sm:$0x3]
        %v223 = vsub.f32 %v221, %v222
        %v224 = vand.u32 2147483647, %v223
        %v225 = vmul.f32 %v224, 3.1415927
        %v226 = vsub.f32 6.2831855, %v225
        %v227 = vmin.f32 %v225, %v226
        %v228 = vmul.f32 %v227, %v227
        %s229 = scalar_lea.vmem %s187, 2 [#allocation2]
        %v230 = vld [vmem:[%s229] sm:$0x3]
        %s231 = scalar_lea.vmem %s196, 2 [#allocation5]
        %v232 = vld [vmem:[%s231] sm:$0x3]
        %v233 = vsub.f32 %v230, %v232
        %v234 = vand.u32 2147483647, %v233
        %v235 = vmul.f32 %v234, 1.5707964
        %v236 = vsub.f32 6.2831855, %v235
        %v237 = vmin.f32 %v235, %v236
        %v238 = vmul.f32 %v237, %v237
        %v239 = vadd.f32 %v228, %v238
        %s240 = scalar_lea.vmem %s187, 4 [#allocation2]
        %v241 = vld [vmem:[%s240] sm:$0x3]
        %s242 = scalar_lea.vmem %s196, 4 [#allocation5]
        %v243 = vld [vmem:[%s242] sm:$0x3]
        %v244 = vsub.f32 %v241, %v243
        %v245 = vand.u32 2147483647, %v244
        %v246 = vmul.f32 %v245, 3.1415927
        %v247 = vsub.f32 6.2831855, %v246
        %v248 = vmin.f32 %v246, %v247
        %v249 = vmul.f32 %v248, %v248
        %v250 = vadd.f32 %v239, %v249
        %vm251 = vcmask 1041408
        %v252 = vsel %vm251, %v250, 0.0
        %v253 = vrot.slane %v252, 4
        %v254 = vadd.f32 %v252, %v253
        %v255 = vrot.slane %v254, 2
        %v256 = vadd.f32 %v254, %v255
        %v257 = vrot.slane %v256, 1
        %v258 = vadd.f32 %v256, %v257
        %259 = vst [vmem:[%s220] sm:$0x1] %v258
        %s260 = sand.u32 %s100, 1
        %s261 = scalar_lea.sflag [#allocation4], %s260
        %s262 = sand.u32 %s100, 1
        %s263 = scalar_lea.vmem [#allocation7], %s262
        // Predicated region
        $region37: #{tpu_custom_call.1} parent=27 // pred_check
          %p264 = pneg %p110
        $region38: #{tpu_custom_call.1} parent=27 // pred_check_branch
          %266 = sbr.rel (%p264) target = $region40
        $region39: #{tpu_custom_call.1} parent=27 // pred_region
          %s268 = ssub.s32 16, 16
          %269 = vsyncadd %s261, %s268
          %s270 = sadd.s32 %s27, %s26
          %s271 = smul.addr %s270, 16
          %s272 = scalar_lea.hbm %s2, %s271
          %s274 = sshll.u32 %s263, 4
          %s275 = int_to_ptr.vmem [resolvable:$true] %s274
          %277 = dma.vmem_to_hbm [thread:$0]  %s275, 16, %s272, %s261
        $region40: #{tpu_custom_call.1} parent=27 // pred_fallthru
          _
      $region28: #{tpu_custom_call.1} parent=5 // pred_fallthru
        _
      %p278 = scmp.le.s32.totalorder 2, %s17
      // Predicated region
      $region41: #{tpu_custom_call.1} parent=5 // pred_check
        %p279 = pneg %p278
      $region42: #{tpu_custom_call.1} parent=5 // pred_check_branch
        %281 = sbr.rel (%p279) target = $region44
      $region43: #{tpu_custom_call.1} parent=5 // pred_region
        %s282 = ssub.s32 %s17, 2
        // Predicated region
        $region45: #{tpu_custom_call.1} parent=43 // pred_check
          %p283 = pneg %p116
        $region46: #{tpu_custom_call.1} parent=43 // pred_check_branch
          %285 = sbr.rel (%p283) target = $region48
        $region47: #{tpu_custom_call.1} parent=43 // pred_region
          %s286 = sand.u32 %s101, 1
          %s287 = scalar_lea.sflag [#allocation4], %s286
          %s288 = sand.u32 %s101, 1
          %s289 = scalar_lea.vmem [#allocation7], %s288
          %290 = dma.done %s287, 16
        $region48: #{tpu_custom_call.1} parent=43 // pred_fallthru
          _
      $region44: #{tpu_custom_call.1} parent=5 // pred_fallthru
        _
    $region6: #{tpu_custom_call.1} parent=1 // loop_footer
      %s21 = sadd.s32 1, %s17
    $region7: #{tpu_custom_call.1} parent=1 // loop_footer_branch
      %16 = sbr.rel target = $region3
    $region8: #{tpu_custom_call.1} parent=1 // loop_exit
      _
    %291 = vsyncpa [#allocation3], 1
    %s292 = scalar_lea.sflag [#allocation3], 1
    %293 = vsyncpa %s292, 1
    %294 = vsyncpa [#allocation6], 1
    %s295 = scalar_lea.sflag [#allocation6], 1
    %296 = vsyncpa %s295, 1
    %297 = vsyncpa [#allocation4], 1
    %s298 = scalar_lea.sflag [#allocation4], 1
    %299 = vsyncpa %s298, 1

</llo_original>
